<compile_context>
chip_gen: v7x
topology: tpu7x:2x2x1
jax: 0.10.0
libtpu: 0.0.40
codegen_flags: <defaults>
</compile_context>

<pallas_src>
import numpy as np
import jax
import jax.numpy as jnp
from jax.experimental import pallas as pl
from jax.experimental.pallas import tpu as pltpu


_COLLAPSE_ELEMS = 16384  # collapse the whole batch into one grid step below this size


def _make_partials_kernel(aligned, H, W, Hp, Wp):
    """Build a kernel producing per-block partial sums:
         sq   = sum((pred - gt)^2)
         msum = sum(mask)
         cnt  = sum(mask > 0)
         gsum = sum(mask * (|p[h,w+1]-p[h,w-1]| + |p[h+1,w]-p[h-1,w]|))
                (== 2 * sum(mask * (|dx| + |dy|)); 0.5 applied in the wrapper)
       with conv2d(padding=1) zero-border behaviour for the central differences."""

    def kernel(pred_ref, gt_ref, mask_ref, sq_ref, msum_ref, cnt_ref, grad_ref,
               *scratch):
        B = pred_ref.shape[0]

        # Cheap border masks: O(H + W) work, not O(H*W) iota/compare/select.
        colw = jax.lax.broadcasted_iota(jnp.int32, (1, Wp), 1)
        rowh = jax.lax.broadcasted_iota(jnp.int32, (Hp, 1), 0)
        not_left = (colw != 0).astype(jnp.float32)        # kill wrapped p[h, w-1] at w == 0
        not_right = (colw != Wp - 1).astype(jnp.float32)  # kill wrapped p[h, w+1] at w == Wp-1
        not_top = (rowh != 0).astype(jnp.float32)
        not_bot = (rowh != Hp - 1).astype(jnp.float32)

        if not aligned:
            pad_ref = scratch[0]
            # Zero once per invocation; the padding region is never overwritten.
            pad_ref[...] = jnp.zeros((Hp, Wp), jnp.float32)

        sq = jnp.zeros((1, 1), jnp.float32)
        msum = jnp.zeros((1, 1), jnp.float32)
        cnt = jnp.zeros((1, 1), jnp.float32)
        gsum = jnp.zeros((1, 1), jnp.float32)

        for b in range(B):  # static unroll; B == 1 except for tiny collapsed levels
            p = pred_ref[b].astype(jnp.float32)   # (H, W)
            g = gt_ref[b].astype(jnp.float32)
            m = mask_ref[b].astype(jnp.float32)

            d = p - g
            sq = sq + jnp.sum(d * d, keepdims=True)
            msum = msum + jnp.sum(m, keepdims=True)
            cnt = cnt + jnp.sum((m > 0.0).astype(jnp.float32), keepdims=True)

            if aligned:
                pp = p
            else:
                pad_ref[:H, :W] = p               # padding region stays zero
                pp = pad_ref[...]

            # 2*dx and 2*dy with zero padding at the borders (0.5 hoisted out).
            p_wm1 = pltpu.roll(pp, shift=1, axis=1) * not_left        # p[h, w-1]
            p_wp1 = pltpu.roll(pp, shift=Wp - 1, axis=1) * not_right  # p[h, w+1]
            p_hm1 = pltpu.roll(pp, shift=1, axis=0) * not_top         # p[h-1, w]
            p_hp1 = pltpu.roll(pp, shift=Hp - 1, axis=0) * not_bot    # p[h+1, w]
            gterm = jnp.abs(p_wp1 - p_wm1) + jnp.abs(p_hp1 - p_hm1)

            if aligned:
                gsum = gsum + jnp.sum(m * gterm, keepdims=True)
            else:
                pad_ref[:H, :W] = m               # padding region still zero
                gsum = gsum + jnp.sum(pad_ref[...] * gterm, keepdims=True)

        sq_ref[0] = sq
        msum_ref[0] = msum
        cnt_ref[0] = cnt
        grad_ref[0] = gsum

    return kernel


def _scale_partials(pred, gt, mask):
    """pred/gt/mask: (N, H, W) arrays (any float/bool dtype) -> four scalar sums."""
    N, H, W = pred.shape
    # Collapse tiny levels into one grid step; otherwise one block per batch
    # element on a parallel grid axis (uses both TensorCores on v7x).
    bb = N if (N * H * W <= _COLLAPSE_ELEMS) else 1
    G = N // bb
    Hp = -(-H // 8) * 8
    Wp = -(-W // 128) * 128
    aligned = (Hp == H) and (Wp == W)

    kernel = _make_partials_kernel(aligned, H, W, Hp, Wp)

    in_spec = pl.BlockSpec((bb, H, W), lambda i: (i, 0, 0))
    out_spec = pl.BlockSpec((1, 1, 1), lambda i: (i, 0, 0))
    out_shape = tuple(jax.ShapeDtypeStruct((G, 1, 1), jnp.float32) for _ in range(4))
    scratch = [] if aligned else [pltpu.VMEM((Hp, Wp), jnp.float32)]

    sq, msum, cnt, gsum = pl.pallas_call(
        kernel,
        out_shape=out_shape,
        grid=(G,),
        in_specs=[in_spec, in_spec, in_spec],
        out_specs=(out_spec, out_spec, out_spec, out_spec),
        scratch_shapes=scratch,
        compiler_params=pltpu.CompilerParams(
            dimension_semantics=("parallel",)),
    )(pred, gt, mask)

    return jnp.sum(sq), jnp.sum(msum), jnp.sum(cnt), jnp.sum(gsum)


def multi_scale_l2_loss(pred_list, gt_list, mask_list, alpha_list, beta_list):
    """Faithful forward of MultiScaleL2Loss (NCHW inputs, C == 1)."""
    total = jnp.float32(0.0)
    for pred, gt, mask, alpha, beta in zip(pred_list, gt_list, mask_list,
                                           alpha_list, beta_list):
        p = pred[:, 0]   # native dtype; upcast happens inside the kernel
        g = gt[:, 0]
        m = mask[:, 0]

        sq, msum, cnt, gsum = _scale_partials(p, g, m)

        numel = jnp.float32(pred.size)       # nn.MSELoss() mean over all elements
        mse = sq / numel
        depth_loss = mse * msum / cnt        # L2Loss: (mask * mse).sum() / (mask>0).sum()
        grad_loss = 0.5 * gsum / cnt         # SquaredGradientLoss (0.5 filter scale hoisted)
        total = total + jnp.float32(alpha) * depth_loss + jnp.float32(beta) * grad_loss
    return total


def _reference_loss(pred_list, gt_list, mask_list, alpha_list, beta_list):
    total = 0.0
    for pred, gt, mask, alpha, beta in zip(pred_list, gt_list, mask_list,
                                           alpha_list, beta_list):
        p = np.asarray(pred, np.float64)
        g = np.asarray(gt, np.float64)
        m = np.asarray(mask, np.float64)
        mse = np.mean((p - g) ** 2)
        depth = (m * mse).sum() / (m > 0).sum()

        pc = p[:, 0]
        pp = np.pad(pc, ((0, 0), (1, 1), (1, 1)))
        dx = 0.5 * (pp[:, 1:-1, 2:] - pp[:, 1:-1, :-2])
        dy = 0.5 * (pp[:, 2:, 1:-1] - pp[:, :-2, 1:-1])
        grad = m[:, 0] * (np.abs(dx) + np.abs(dy))
        gl = grad.sum() / (m > 0).sum()

        total += alpha * depth + beta * gl
    return np.float64(total)


if __name__ == "__main__":
    key = jax.random.PRNGKey(0)
    # Four-scale pyramid of depth maps (NCHW, C == 1).
    # First level exercises the per-batch parallel + aligned (no-scratch) path;
    # the smaller levels exercise the collapsed-batch + scratch-padded path.
    shapes = [(2, 1, 96, 128), (2, 1, 48, 64), (2, 1, 24, 32), (2, 1, 12, 16)]
    alpha_list = [1.0, 0.7, 0.5, 0.3]
    beta_list = [0.1, 0.07, 0.05, 0.03]

    pred_list, gt_list, mask_list = [], [], []
    for shp in shapes:
        key, k1, k2, k3 = jax.random.split(key, 4)
        pred_list.append(jax.random.normal(k1, shp, jnp.float32))
        gt_list.append(jax.random.normal(k2, shp, jnp.float32))
        mask_list.append((jax.random.uniform(k3, shp) > 0.3).astype(jnp.float32))

    loss = multi_scale_l2_loss(pred_list, gt_list, mask_list, alpha_list, beta_list)
    loss = jax.block_until_ready(loss)

    ref = _reference_loss(pred_list, gt_list, mask_list, alpha_list, beta_list)
    assert np.allclose(np.asarray(loss), ref, rtol=1e-4, atol=1e-4), (float(loss), float(ref))

    print("KERNEL_OK")
</pallas_src>

<mosaic_0001>
module attributes {stable_mosaic.version = 11 : i64} {
  func.func @kernel(%arg0: i32, %arg1: memref<1x96x128xf32, #tpu.memory_space<vmem>>, %arg2: memref<1x96x128xf32, #tpu.memory_space<vmem>>, %arg3: memref<1x96x128xf32, #tpu.memory_space<vmem>>, %arg4: memref<1x1x1xf32, #tpu.memory_space<vmem>>, %arg5: memref<1x1x1xf32, #tpu.memory_space<vmem>>, %arg6: memref<1x1x1xf32, #tpu.memory_space<vmem>>, %arg7: memref<1x1x1xf32, #tpu.memory_space<vmem>>) attributes {dimension_semantics = [#tpu.dimension_semantics<parallel>], iteration_bounds = array<i64: 2>, scalar_prefetch = 0 : i64, scratch_operands = 0 : i64, tpu.core_type = #tpu.core_type<tc>, window_params = [{transform_indices = @transform_0, window_bounds = array<i64: 1, 96, 128>}, {transform_indices = @transform_1, window_bounds = array<i64: 1, 96, 128>}, {transform_indices = @transform_2, window_bounds = array<i64: 1, 96, 128>}, {transform_indices = @transform_3, window_bounds = array<i64: 1, 1, 1>}, {transform_indices = @transform_4, window_bounds = array<i64: 1, 1, 1>}, {transform_indices = @transform_5, window_bounds = array<i64: 1, 1, 1>}, {transform_indices = @transform_6, window_bounds = array<i64: 1, 1, 1>}]} {
    %0 = tpu.iota {dimensions = array<i32: 1>} : vector<1x128xi32>
    %1 = tpu.iota {dimensions = array<i32: 0>} : vector<96x1xi32>
    %c0_i32 = arith.constant 0 : i32
    %2 = vector.broadcast %c0_i32 : i32 to vector<1x128xi32>
    %3 = arith.cmpi ne, %0, %2 : vector<1x128xi32>
    %4 = arith.extui %3 : vector<1x128xi1> to vector<1x128xi32>
    %5 = arith.sitofp %4 : vector<1x128xi32> to vector<1x128xf32>
    %c127_i32 = arith.constant 127 : i32
    %6 = vector.broadcast %c127_i32 : i32 to vector<1x128xi32>
    %7 = arith.cmpi ne, %0, %6 : vector<1x128xi32>
    %8 = arith.extui %7 : vector<1x128xi1> to vector<1x128xi32>
    %9 = arith.sitofp %8 : vector<1x128xi32> to vector<1x128xf32>
    %c0_i32_0 = arith.constant 0 : i32
    %10 = vector.broadcast %c0_i32_0 : i32 to vector<96x1xi32>
    %11 = arith.cmpi ne, %1, %10 : vector<96x1xi32>
    %12 = arith.extui %11 : vector<96x1xi1> to vector<96x1xi32>
    %13 = arith.sitofp %12 : vector<96x1xi32> to vector<96x1xf32>
    %c95_i32 = arith.constant 95 : i32
    %14 = vector.broadcast %c95_i32 : i32 to vector<96x1xi32>
    %15 = arith.cmpi ne, %1, %14 : vector<96x1xi32>
    %16 = arith.extui %15 : vector<96x1xi1> to vector<96x1xi32>
    %17 = arith.sitofp %16 : vector<96x1xi32> to vector<96x1xf32>
    %cst = arith.constant 0.000000e+00 : f32
    %18 = vector.broadcast %cst : f32 to vector<1x1xf32>
    %cst_1 = arith.constant 0.000000e+00 : f32
    %19 = vector.broadcast %cst_1 : f32 to vector<1x1xf32>
    %cst_2 = arith.constant 0.000000e+00 : f32
    %20 = vector.broadcast %cst_2 : f32 to vector<1x1xf32>
    %cst_3 = arith.constant 0.000000e+00 : f32
    %21 = vector.broadcast %cst_3 : f32 to vector<1x1xf32>
    %c0 = arith.constant 0 : index
    %c0_4 = arith.constant 0 : index
    %c0_5 = arith.constant 0 : index
    %22 = vector.load %arg1[%c0, %c0_4, %c0_5] : memref<1x96x128xf32, #tpu.memory_space<vmem>>, vector<1x96x128xf32>
    %23 = vector.shape_cast %22 : vector<1x96x128xf32> to vector<96x128xf32>
    %c0_6 = arith.constant 0 : index
    %c0_7 = arith.constant 0 : index
    %c0_8 = arith.constant 0 : index
    %24 = vector.load %arg2[%c0_6, %c0_7, %c0_8] : memref<1x96x128xf32, #tpu.memory_space<vmem>>, vector<1x96x128xf32>
    %25 = vector.shape_cast %24 : vector<1x96x128xf32> to vector<96x128xf32>
    %c0_9 = arith.constant 0 : index
    %c0_10 = arith.constant 0 : index
    %c0_11 = arith.constant 0 : index
    %26 = vector.load %arg3[%c0_9, %c0_10, %c0_11] : memref<1x96x128xf32, #tpu.memory_space<vmem>>, vector<1x96x128xf32>
    %27 = vector.shape_cast %26 : vector<1x96x128xf32> to vector<96x128xf32>
    %28 = arith.subf %23, %25 : vector<96x128xf32>
    %29 = arith.mulf %28, %28 : vector<96x128xf32>
    %30 = vector.shape_cast %29 : vector<96x128xf32> to vector<1x96x128xf32>
    %cst_12 = arith.constant dense<0.000000e+00> : vector<1xf32>
    %31 = vector.multi_reduction <add>, %30, %cst_12 [1, 2] : vector<1x96x128xf32> to vector<1xf32>
    %32 = vector.shape_cast %31 : vector<1xf32> to vector<1x1x1xf32>
    %33 = vector.extract %32[0, 0, 0] : f32 from vector<1x1x1xf32>
    %34 = vector.broadcast %33 : f32 to vector<1x1xf32>
    %35 = arith.addf %18, %34 : vector<1x1xf32>
    %36 = vector.shape_cast %27 : vector<96x128xf32> to vector<1x96x128xf32>
    %cst_13 = arith.constant dense<0.000000e+00> : vector<1xf32>
    %37 = vector.multi_reduction <add>, %36, %cst_13 [1, 2] : vector<1x96x128xf32> to vector<1xf32>
    %38 = vector.shape_cast %37 : vector<1xf32> to vector<1x1x1xf32>
    %39 = vector.extract %38[0, 0, 0] : f32 from vector<1x1x1xf32>
    %40 = vector.broadcast %39 : f32 to vector<1x1xf32>
    %41 = arith.addf %19, %40 : vector<1x1xf32>
    %cst_14 = arith.constant 0.000000e+00 : f32
    %42 = vector.broadcast %cst_14 : f32 to vector<96x128xf32>
    %43 = arith.cmpf ogt, %27, %42 : vector<96x128xf32>
    %44 = arith.extui %43 : vector<96x128xi1> to vector<96x128xi32>
    %45 = arith.sitofp %44 : vector<96x128xi32> to vector<96x128xf32>
    %46 = vector.shape_cast %45 : vector<96x128xf32> to vector<1x96x128xf32>
    %cst_15 = arith.constant dense<0.000000e+00> : vector<1xf32>
    %47 = vector.multi_reduction <add>, %46, %cst_15 [1, 2] : vector<1x96x128xf32> to vector<1xf32>
    %48 = vector.shape_cast %47 : vector<1xf32> to vector<1x1x1xf32>
    %49 = vector.extract %48[0, 0, 0] : f32 from vector<1x1x1xf32>
    %50 = vector.broadcast %49 : f32 to vector<1x1xf32>
    %51 = arith.addf %20, %50 : vector<1x1xf32>
    %c1_i32 = arith.constant 1 : i32
    %52 = tpu.dynamic_rotate %23 by %c1_i32 dim 1 : vector<96x128xf32>, i32 -> vector<96x128xf32>
    %53 = vector.broadcast %5 : vector<1x128xf32> to vector<96x128xf32>
    %54 = arith.mulf %52, %53 : vector<96x128xf32>
    %c127_i32_16 = arith.constant 127 : i32
    %55 = tpu.dynamic_rotate %23 by %c127_i32_16 dim 1 : vector<96x128xf32>, i32 -> vector<96x128xf32>
    %56 = vector.broadcast %9 : vector<1x128xf32> to vector<96x128xf32>
    %57 = arith.mulf %55, %56 : vector<96x128xf32>
    %c1_i32_17 = arith.constant 1 : i32
    %58 = tpu.dynamic_rotate %23 by %c1_i32_17 dim 0 : vector<96x128xf32>, i32 -> vector<96x128xf32>
    %59 = vector.broadcast %13 : vector<96x1xf32> to vector<96x128xf32>
    %60 = arith.mulf %58, %59 : vector<96x128xf32>
    %c95_i32_18 = arith.constant 95 : i32
    %61 = tpu.dynamic_rotate %23 by %c95_i32_18 dim 0 : vector<96x128xf32>, i32 -> vector<96x128xf32>
    %62 = vector.broadcast %17 : vector<96x1xf32> to vector<96x128xf32>
    %63 = arith.mulf %61, %62 : vector<96x128xf32>
    %64 = arith.subf %57, %54 : vector<96x128xf32>
    %65 = math.absf %64 : vector<96x128xf32>
    %66 = arith.subf %63, %60 : vector<96x128xf32>
    %67 = math.absf %66 : vector<96x128xf32>
    %68 = arith.addf %65, %67 : vector<96x128xf32>
    %69 = arith.mulf %27, %68 : vector<96x128xf32>
    %70 = vector.shape_cast %69 : vector<96x128xf32> to vector<1x96x128xf32>
    %cst_19 = arith.constant dense<0.000000e+00> : vector<1xf32>
    %71 = vector.multi_reduction <add>, %70, %cst_19 [1, 2] : vector<1x96x128xf32> to vector<1xf32>
    %72 = vector.shape_cast %71 : vector<1xf32> to vector<1x1x1xf32>
    %73 = vector.extract %72[0, 0, 0] : f32 from vector<1x1x1xf32>
    %74 = vector.broadcast %73 : f32 to vector<1x1xf32>
    %75 = arith.addf %21, %74 : vector<1x1xf32>
    %c0_20 = arith.constant 0 : index
    %c0_21 = arith.constant 0 : index
    %c0_22 = arith.constant 0 : index
    %76 = vector.load %arg4[%c0_20, %c0_21, %c0_22] : memref<1x1x1xf32, #tpu.memory_space<vmem>>, vector<1x1x1xf32>
    %77 = vector.shape_cast %76 : vector<1x1x1xf32> to vector<1x1xf32>
    %78 = vector.shape_cast %35 : vector<1x1xf32> to vector<1x1x1xf32>
    tpu.vector_store %arg4[%c0_20, %c0_21, %c0_22], %78 {strides = array<i32>} : memref<1x1x1xf32, #tpu.memory_space<vmem>>, vector<1x1x1xf32>,
    %c0_23 = arith.constant 0 : index
    %c0_24 = arith.constant 0 : index
    %c0_25 = arith.constant 0 : index
    %79 = vector.load %arg5[%c0_23, %c0_24, %c0_25] : memref<1x1x1xf32, #tpu.memory_space<vmem>>, vector<1x1x1xf32>
    %80 = vector.shape_cast %79 : vector<1x1x1xf32> to vector<1x1xf32>
    %81 = vector.shape_cast %41 : vector<1x1xf32> to vector<1x1x1xf32>
    tpu.vector_store %arg5[%c0_23, %c0_24, %c0_25], %81 {strides = array<i32>} : memref<1x1x1xf32, #tpu.memory_space<vmem>>, vector<1x1x1xf32>,
    %c0_26 = arith.constant 0 : index
    %c0_27 = arith.constant 0 : index
    %c0_28 = arith.constant 0 : index
    %82 = vector.load %arg6[%c0_26, %c0_27, %c0_28] : memref<1x1x1xf32, #tpu.memory_space<vmem>>, vector<1x1x1xf32>
    %83 = vector.shape_cast %82 : vector<1x1x1xf32> to vector<1x1xf32>
    %84 = vector.shape_cast %51 : vector<1x1xf32> to vector<1x1x1xf32>
    tpu.vector_store %arg6[%c0_26, %c0_27, %c0_28], %84 {strides = array<i32>} : memref<1x1x1xf32, #tpu.memory_space<vmem>>, vector<1x1x1xf32>,
    %c0_29 = arith.constant 0 : index
    %c0_30 = arith.constant 0 : index
    %c0_31 = arith.constant 0 : index
    %85 = vector.load %arg7[%c0_29, %c0_30, %c0_31] : memref<1x1x1xf32, #tpu.memory_space<vmem>>, vector<1x1x1xf32>
    %86 = vector.shape_cast %85 : vector<1x1x1xf32> to vector<1x1xf32>
    %87 = vector.shape_cast %75 : vector<1x1xf32> to vector<1x1x1xf32>
    tpu.vector_store %arg7[%c0_29, %c0_30, %c0_31], %87 {strides = array<i32>} : memref<1x1x1xf32, #tpu.memory_space<vmem>>, vector<1x1x1xf32>,
    return
  }
  func.func @transform_0(%arg0: i32) -> (i32, i32, i32) {
    %c0_i32 = arith.constant 0 : i32
    %c0_i32_0 = arith.constant 0 : i32
    %c0_i32_1 = arith.constant 0 : i32
    return %arg0, %c0_i32, %c0_i32_0 : i32, i32, i32
  }
  func.func @transform_1(%arg0: i32) -> (i32, i32, i32) {
    %c0_i32 = arith.constant 0 : i32
    %c0_i32_0 = arith.constant 0 : i32
    %c0_i32_1 = arith.constant 0 : i32
    return %arg0, %c0_i32, %c0_i32_0 : i32, i32, i32
  }
  func.func @transform_2(%arg0: i32) -> (i32, i32, i32) {
    %c0_i32 = arith.constant 0 : i32
    %c0_i32_0 = arith.constant 0 : i32
    %c0_i32_1 = arith.constant 0 : i32
    return %arg0, %c0_i32, %c0_i32_0 : i32, i32, i32
  }
  func.func @transform_3(%arg0: i32) -> (i32, i32, i32) {
    %c0_i32 = arith.constant 0 : i32
    %c0_i32_0 = arith.constant 0 : i32
    %c0_i32_1 = arith.constant 0 : i32
    return %arg0, %c0_i32, %c0_i32_0 : i32, i32, i32
  }
  func.func @transform_4(%arg0: i32) -> (i32, i32, i32) {
    %c0_i32 = arith.constant 0 : i32
    %c0_i32_0 = arith.constant 0 : i32
    %c0_i32_1 = arith.constant 0 : i32
    return %arg0, %c0_i32, %c0_i32_0 : i32, i32, i32
  }
  func.func @transform_5(%arg0: i32) -> (i32, i32, i32) {
    %c0_i32 = arith.constant 0 : i32
    %c0_i32_0 = arith.constant 0 : i32
    %c0_i32_1 = arith.constant 0 : i32
    return %arg0, %c0_i32, %c0_i32_0 : i32, i32, i32
  }
  func.func @transform_6(%arg0: i32) -> (i32, i32, i32) {
    %c0_i32 = arith.constant 0 : i32
    %c0_i32_0 = arith.constant 0 : i32
    %c0_i32_1 = arith.constant 0 : i32
    return %arg0, %c0_i32, %c0_i32_0 : i32, i32, i32
  }
}

</mosaic_0001>

<llo_original>
// kernel: tpu_custom_call.1
$region0: #{tpu_custom_call.1}
  #allocation0 [shape = 'u32[]', space=smem, size = 0x4, offset = 0x4, fixed_abs, tag = 'smem constant byte address 0x4 - core index']
  #allocation1 [shape = 'u32[144,128]{1,0:T(1,128)}', space=vmem, size = 0x12000, scoped, tag = 'internal scratch']
  %s0 = inlined_call_operand.hbm [shape: f32[2,96,128], index: 0, kind: input, shape index: {}]
  %s1 = inlined_call_operand.hbm [shape: f32[2,96,128], index: 1, kind: input, shape index: {}]
  %s2 = inlined_call_operand.hbm [shape: f32[2,96,128], index: 2, kind: input, shape index: {}]
  %s3 = inlined_call_operand.vmem [shape: f32[2,1,1], index: 3, kind: output, shape index: {0}]
  %s4 = inlined_call_operand.vmem [shape: f32[2,1,1], index: 4, kind: output, shape index: {1}]
  %s5 = inlined_call_operand.vmem [shape: f32[2,1,1], index: 5, kind: output, shape index: {2}]
  %s6 = inlined_call_operand.vmem [shape: f32[2,1,1], index: 6, kind: output, shape index: {3}]
  %7 = xla_tuple %s3, %s4, %s5, %s6
  %s8 = sld [smem:[#allocation0]]
  $region81: #{tpu_custom_call.1} parent=0
    _
  %s10 = ssub.s32 1, %s8
  %s11 = scalar_select 0, %s10, %s8
  $region1: #{tpu_custom_call.1} parent=0
    #allocation2 [shape = 'u8[98304]{0}', space=vmem, size = 0x18000, scoped, tag = 'input window, operand 0']
    #allocation3 [shape = 's32[2]{0}', space=sflag, size = 0x8, scoped, tag = 'scoped memory for tpu_custom_call.1']
    #allocation4 [shape = 'u8[98304]{0}', space=vmem, size = 0x18000, scoped, tag = 'input window, operand 1']
    #allocation5 [shape = 's32[2]{0}', space=sflag, size = 0x8, scoped, tag = 'scoped memory for tpu_custom_call.1']
    #allocation6 [shape = 'u8[98304]{0}', space=vmem, size = 0x18000, scoped, tag = 'input window, operand 2']
    %12 = vsyncpa [#allocation3], 0
    %s13 = scalar_lea.sflag [#allocation3], 1
    %14 = vsyncpa %s13, 0
    %15 = vsyncpa [#allocation5], 0
    %s16 = scalar_lea.sflag [#allocation5], 1
    %17 = vsyncpa %s16, 0
    loop: start=0, step=1, limit=4
    $region2: #{tpu_custom_call.1} parent=1 // loop_pre_header
      _
    $region3: #{tpu_custom_call.1} parent=1 // loop_header
      %s19 = sphi 0, %s23
      %p20 = scmp.ge.s32.totalorder %s19, 4
      %s29 = sphi 0, %s31
      %s32 = sphi 0, %s29
      %s33 = sphi 0, %s32
      %s49 = sphi 0, %s33
      %s55 = sphi 0, %s57
      %s58 = sphi 0, %s55
      %s59 = sphi 0, %s58
      %s75 = sphi 0, %s59
      %s81 = sphi 0, %s83
      %s84 = sphi 0, %s81
      %s85 = sphi 0, %s84
      %s101 = sphi 0, %s85
      %s107 = sphi 0, %s109
      %s110 = sphi 0, %s107
      %s111 = sphi 0, %s110
      %s127 = sphi 0, %s111
      %s133 = sphi 0, %s135
      %s136 = sphi 0, %s133
      %s137 = sphi 0, %s136
      %s153 = sphi 0, %s137
      %s159 = sphi 0, %s161
      %s162 = sphi 0, %s159
      %s163 = sphi 0, %s162
      %s179 = sphi 0, %s163
      %s185 = sphi 0, %s187
      %s188 = sphi 0, %s185
      %s189 = sphi 0, %s188
      %s205 = sphi 0, %s189
    $region4: #{tpu_custom_call.1} parent=1 // loop_header_branch
      %22 = sbr.rel (%p20) target = $region8
    $region5: #{tpu_custom_call.1} parent=1 // loop_body
      %s24 = ssub.s32 %s19, 1
      %s25 = ssub.s32 %s19, 2
      %s26 = sadd.s32 %s19, 1
      %s27 = ssub.s32 %s19, %s26
      %p28 = scmp.eq.s32.totalorder %s27, 0
      %s30 = sadd.s32 %s29, 1
      %s31 = scalar_select %p28, %s29, %s30
      %p34 = pneg %p28
      %p35 = scmp.eq.s32.totalorder %s19, 1
      %p36 = por %p34, %p35
      %p37 = scmp.ne.s32.totalorder %s29, %s32
      %p38 = scmp.eq.s32.totalorder %s19, 0
      %p39 = por %p37, %p38
      %p40 = scmp.ne.s32.totalorder %s29, %s32
      %p41 = scmp.eq.s32.totalorder %s24, 1
      %p42 = por %p40, %p41
      %p43 = scmp.ne.s32.totalorder %s32, %s33
      %p44 = scmp.eq.s32.totalorder %s24, 0
      %p45 = por %p43, %p44
      %p46 = scmp.ne.s32.totalorder %s32, %s33
      %p47 = scmp.eq.s32.totalorder %s25, 1
      %p48 = por %p46, %p47
      %p50 = scmp.ne.s32.totalorder %s33, %s49
      %p51 = scmp.eq.s32.totalorder %s25, 0
      %p52 = por %p50, %p51
      %s53 = ssub.s32 %s19, %s26
      %p54 = scmp.eq.s32.totalorder %s53, 0
      %s56 = sadd.s32 %s55, 1
      %s57 = scalar_select %p54, %s55, %s56
      %p60 = pneg %p54
      %p61 = scmp.eq.s32.totalorder %s19, 1
      %p62 = por %p60, %p61
      %p63 = scmp.ne.s32.totalorder %s55, %s58
      %p64 = scmp.eq.s32.totalorder %s19, 0
      %p65 = por %p63, %p64
      %p66 = scmp.ne.s32.totalorder %s55, %s58
      %p67 = scmp.eq.s32.totalorder %s24, 1
      %p68 = por %p66, %p67
      %p69 = scmp.ne.s32.totalorder %s58, %s59
      %p70 = scmp.eq.s32.totalorder %s24, 0
      %p71 = por %p69, %p70
      %p72 = scmp.ne.s32.totalorder %s58, %s59
      %p73 = scmp.eq.s32.totalorder %s25, 1
      %p74 = por %p72, %p73
      %p76 = scmp.ne.s32.totalorder %s59, %s75
      %p77 = scmp.eq.s32.totalorder %s25, 0
      %p78 = por %p76, %p77
      %s79 = ssub.s32 %s19, %s26
      %p80 = scmp.eq.s32.totalorder %s79, 0
      %s82 = sadd.s32 %s81, 1
      %s83 = scalar_select %p80, %s81, %s82
      %p86 = pneg %p80
      %p87 = scmp.eq.s32.totalorder %s19, 1
      %p88 = por %p86, %p87
      %p89 = scmp.ne.s32.totalorder %s81, %s84
      %p90 = scmp.eq.s32.totalorder %s19, 0
      %p91 = por %p89, %p90
      %p92 = scmp.ne.s32.totalorder %s81, %s84
      %p93 = scmp.eq.s32.totalorder %s24, 1
      %p94 = por %p92, %p93
      %p95 = scmp.ne.s32.totalorder %s84, %s85
      %p96 = scmp.eq.s32.totalorder %s24, 0
      %p97 = por %p95, %p96
      %p98 = scmp.ne.s32.totalorder %s84, %s85
      %p99 = scmp.eq.s32.totalorder %s25, 1
      %p100 = por %p98, %p99
      %p102 = scmp.ne.s32.totalorder %s85, %s101
      %p103 = scmp.eq.s32.totalorder %s25, 0
      %p104 = por %p102, %p103
      %s105 = ssub.s32 %s19, %s26
      %p106 = scmp.eq.s32.totalorder %s105, 0
      %s108 = sadd.s32 %s107, 1
      %s109 = scalar_select %p106, %s107, %s108
      %p112 = pneg %p106
      %p113 = scmp.eq.s32.totalorder %s19, 1
      %p114 = por %p112, %p113
      %p115 = scmp.ne.s32.totalorder %s107, %s110
      %p116 = scmp.eq.s32.totalorder %s19, 0
      %p117 = por %p115, %p116
      %p118 = scmp.ne.s32.totalorder %s107, %s110
      %p119 = scmp.eq.s32.totalorder %s24, 1
      %p120 = por %p118, %p119
      %p121 = scmp.ne.s32.totalorder %s110, %s111
      %p122 = scmp.eq.s32.totalorder %s24, 0
      %p123 = por %p121, %p122
      %p124 = scmp.ne.s32.totalorder %s110, %s111
      %p125 = scmp.eq.s32.totalorder %s25, 1
      %p126 = por %p124, %p125
      %p128 = scmp.ne.s32.totalorder %s111, %s127
      %p129 = scmp.eq.s32.totalorder %s25, 0
      %p130 = por %p128, %p129
      %s131 = ssub.s32 %s19, %s26
      %p132 = scmp.eq.s32.totalorder %s131, 0
      %s134 = sadd.s32 %s133, 1
      %s135 = scalar_select %p132, %s133, %s134
      %p138 = pneg %p132
      %p139 = scmp.eq.s32.totalorder %s19, 1
      %p140 = por %p138, %p139
      %p141 = scmp.ne.s32.totalorder %s133, %s136
      %p142 = scmp.eq.s32.totalorder %s19, 0
      %p143 = por %p141, %p142
      %p144 = scmp.ne.s32.totalorder %s133, %s136
      %p145 = scmp.eq.s32.totalorder %s24, 1
      %p146 = por %p144, %p145
      %p147 = scmp.ne.s32.totalorder %s136, %s137
      %p148 = scmp.eq.s32.totalorder %s24, 0
      %p149 = por %p147, %p148
      %p150 = scmp.ne.s32.totalorder %s136, %s137
      %p151 = scmp.eq.s32.totalorder %s25, 1
      %p152 = por %p150, %p151
      %p154 = scmp.ne.s32.totalorder %s137, %s153
      %p155 = scmp.eq.s32.totalorder %s25, 0
      %p156 = por %p154, %p155
      %s157 = ssub.s32 %s19, %s26
      %p158 = scmp.eq.s32.totalorder %s157, 0
      %s160 = sadd.s32 %s159, 1
      %s161 = scalar_select %p158, %s159, %s160
      %p164 = pneg %p158
      %p165 = scmp.eq.s32.totalorder %s19, 1
      %p166 = por %p164, %p165
      %p167 = scmp.ne.s32.totalorder %s159, %s162
      %p168 = scmp.eq.s32.totalorder %s19, 0
      %p169 = por %p167, %p168
      %p170 = scmp.ne.s32.totalorder %s159, %s162
      %p171 = scmp.eq.s32.totalorder %s24, 1
      %p172 = por %p170, %p171
      %p173 = scmp.ne.s32.totalorder %s162, %s163
      %p174 = scmp.eq.s32.totalorder %s24, 0
      %p175 = por %p173, %p174
      %p176 = scmp.ne.s32.totalorder %s162, %s163
      %p177 = scmp.eq.s32.totalorder %s25, 1
      %p178 = por %p176, %p177
      %p180 = scmp.ne.s32.totalorder %s163, %s179
      %p181 = scmp.eq.s32.totalorder %s25, 0
      %p182 = por %p180, %p181
      %s183 = ssub.s32 %s19, %s26
      %p184 = scmp.eq.s32.totalorder %s183, 0
      %s186 = sadd.s32 %s185, 1
      %s187 = scalar_select %p184, %s185, %s186
      %p190 = pneg %p184
      %p191 = scmp.eq.s32.totalorder %s19, 1
      %p192 = por %p190, %p191
      %p193 = scmp.ne.s32.totalorder %s185, %s188
      %p194 = scmp.eq.s32.totalorder %s19, 0
      %p195 = por %p193, %p194
      %p196 = scmp.ne.s32.totalorder %s185, %s188
      %p197 = scmp.eq.s32.totalorder %s24, 1
      %p198 = por %p196, %p197
      %p199 = scmp.ne.s32.totalorder %s188, %s189
      %p200 = scmp.eq.s32.totalorder %s24, 0
      %p201 = por %p199, %p200
      %p202 = scmp.ne.s32.totalorder %s188, %s189
      %p203 = scmp.eq.s32.totalorder %s25, 1
      %p204 = por %p202, %p203
      %p206 = scmp.ne.s32.totalorder %s189, %s205
      %p207 = scmp.eq.s32.totalorder %s25, 0
      %p208 = por %p206, %p207
      %p209 = scmp.le.s32.totalorder 1, %s19
      %p210 = scmp.lt.s32.totalorder %s19, 3
      %p211 = pnand %p209, %p210
      %p212 = pneg %p211
      // Predicated region
      $region9: #{tpu_custom_call.1} parent=5 // pred_check
        _
      $region10: #{tpu_custom_call.1} parent=5 // pred_check_branch
        %214 = sbr.rel (%p211) target = $region12
      $region11: #{tpu_custom_call.1} parent=5 // pred_region
        %s215 = ssub.s32 %s19, 1
      $region12: #{tpu_custom_call.1} parent=5 // pred_fallthru
        _
      %p216 = scmp.lt.s32.totalorder %s19, 2
      // Predicated region
      $region13: #{tpu_custom_call.1} parent=5 // pred_check
        %p217 = pneg %p216
      $region14: #{tpu_custom_call.1} parent=5 // pred_check_branch
        %219 = sbr.rel (%p217) target = $region16
      $region15: #{tpu_custom_call.1} parent=5 // pred_region
        // Predicated region
        $region17: #{tpu_custom_call.1} parent=15 // pred_check
          %p220 = pneg %p39
        $region18: #{tpu_custom_call.1} parent=15 // pred_check_branch
          %222 = sbr.rel (%p220) target = $region20
        $region19: #{tpu_custom_call.1} parent=15 // pred_region
          %s223 = sand.u32 %s29, 1
          %s224 = scalar_lea.sflag [#allocation3], %s223
          %s225 = sand.u32 %s29, 1
          %s226 = smul.addr %s225, 96
          %s227 = scalar_lea.vmem [#allocation2], %s226
          %s229 = ssub.s32 1536, 1536
          %230 = vsyncadd %s224, %s229
          %s231 = smul.addr %s19, 12
          %s232 = smul.addr %s231, 128
          %s233 = scalar_lea.hbm %s0, %s232
          %s234 = sshll.u32 %s227, 4
          %s235 = int_to_ptr.vmem [resolvable:$true] %s234
          %240 = dma.hbm_to_vmem [thread:$0]  %s233, 1536, %s235, %s224, 128, 128, 8
        $region20: #{tpu_custom_call.1} parent=15 // pred_fallthru
          _
        // Predicated region
        $region21: #{tpu_custom_call.1} parent=15 // pred_check
          %p241 = pneg %p65
        $region22: #{tpu_custom_call.1} parent=15 // pred_check_branch
          %243 = sbr.rel (%p241) target = $region24
        $region23: #{tpu_custom_call.1} parent=15 // pred_region
          %s244 = sand.u32 %s19, 1
          %s245 = scalar_lea.sflag [#allocation5], %s244
          %s246 = sand.u32 %s55, 1
          %s247 = smul.addr %s246, 96
          %s248 = scalar_lea.vmem [#allocation4], %s247
          %s250 = ssub.s32 1536, 1536
          %251 = vsyncadd %s245, %s250
          %s252 = smul.addr %s19, 12
          %s253 = smul.addr %s252, 128
          %s254 = scalar_lea.hbm %s1, %s253
          %s255 = sshll.u32 %s248, 4
          %s256 = int_to_ptr.vmem [resolvable:$true] %s255
          %261 = dma.hbm_to_vmem [thread:$0]  %s254, 1536, %s256, %s245, 128, 128, 8
        $region24: #{tpu_custom_call.1} parent=15 // pred_fallthru
          _
        // Predicated region
        $region25: #{tpu_custom_call.1} parent=15 // pred_check
          %p262 = pneg %p91
        $region26: #{tpu_custom_call.1} parent=15 // pred_check_branch
          %264 = sbr.rel (%p262) target = $region28
        $region27: #{tpu_custom_call.1} parent=15 // pred_region
          %s265 = sand.u32 %s19, 1
          %s266 = scalar_lea.sflag [#allocation5], %s265
          %s267 = sand.u32 %s81, 1
          %s268 = smul.addr %s267, 96
          %s269 = scalar_lea.vmem [#allocation6], %s268
          %s271 = ssub.s32 1536, 1536
          %272 = vsyncadd %s266, %s271
          %s273 = smul.addr %s19, 12
          %s274 = smul.addr %s273, 128
          %s275 = scalar_lea.hbm %s2, %s274
          %s276 = sshll.u32 %s269, 4
          %s277 = int_to_ptr.vmem [resolvable:$true] %s276
          %282 = dma.hbm_to_vmem [thread:$0]  %s275, 1536, %s277, %s266, 128, 128, 8
        $region28: #{tpu_custom_call.1} parent=15 // pred_fallthru
          _
      $region16: #{tpu_custom_call.1} parent=5 // pred_fallthru
        _
      %p283 = scmp.le.s32.totalorder 1, %s19
      %p284 = scmp.lt.s32.totalorder %s19, 3
      %p285 = pnand %p283, %p284
      %p286 = pneg %p285
      // Predicated region
      $region29: #{tpu_custom_call.1} parent=5 // pred_check
        _
      $region30: #{tpu_custom_call.1} parent=5 // pred_check_branch
        %288 = sbr.rel (%p285) target = $region32
      $region31: #{tpu_custom_call.1} parent=5 // pred_region
        %s289 = ssub.s32 %s19, 1
        %s290 = sand.u32 %s32, 1
        %s291 = scalar_lea.sflag [#allocation3], %s290
        %s292 = sand.u32 %s32, 1
        %s293 = smul.addr %s292, 96
        %s294 = scalar_lea.vmem [#allocation2], %s293
        // Predicated region
        $region33: #{tpu_custom_call.1} parent=31 // pred_check
          %p295 = pneg %p45
        $region34: #{tpu_custom_call.1} parent=31 // pred_check_branch
          %297 = sbr.rel (%p295) target = $region36
        $region35: #{tpu_custom_call.1} parent=31 // pred_region
          %298 = dma.done %s291, 1536
        $region36: #{tpu_custom_call.1} parent=31 // pred_fallthru
          _
        %s299 = sand.u32 %s24, 1
        %s300 = scalar_lea.sflag [#allocation5], %s299
        %s301 = sand.u32 %s58, 1
        %s302 = smul.addr %s301, 96
        %s303 = scalar_lea.vmem [#allocation4], %s302
        // Predicated region
        $region37: #{tpu_custom_call.1} parent=31 // pred_check
          %p304 = pneg %p71
        $region38: #{tpu_custom_call.1} parent=31 // pred_check_branch
          %306 = sbr.rel (%p304) target = $region40
        $region39: #{tpu_custom_call.1} parent=31 // pred_region
          %307 = dma.done %s300, 1536
        $region40: #{tpu_custom_call.1} parent=31 // pred_fallthru
          _
        %s308 = sand.u32 %s24, 1
        %s309 = scalar_lea.sflag [#allocation5], %s308
        %s310 = sand.u32 %s84, 1
        %s311 = smul.addr %s310, 96
        %s312 = scalar_lea.vmem [#allocation6], %s311
        // Predicated region
        $region41: #{tpu_custom_call.1} parent=31 // pred_check
          %p313 = pneg %p97
        $region42: #{tpu_custom_call.1} parent=31 // pred_check_branch
          %315 = sbr.rel (%p313) target = $region44
        $region43: #{tpu_custom_call.1} parent=31 // pred_region
          %316 = dma.done %s309, 1536
        $region44: #{tpu_custom_call.1} parent=31 // pred_fallthru
          _
        %s317 = sand.u32 %s32, 1
        %s318 = scalar_lea.sflag [#allocation3], %s317
        %s319 = sand.u32 %s32, 1
        %s320 = smul.addr %s319, 96
        %s321 = scalar_lea.vmem [#allocation2], %s320
        %p322 = pneg %p45
        %p323 = pneg %p42
        %s324 = sand.u32 %s24, 1
        %s325 = scalar_lea.sflag [#allocation5], %s324
        %s326 = sand.u32 %s58, 1
        %s327 = smul.addr %s326, 96
        %s328 = scalar_lea.vmem [#allocation4], %s327
        %p329 = pneg %p71
        %p330 = pneg %p68
        %s331 = sand.u32 %s24, 1
        %s332 = scalar_lea.sflag [#allocation5], %s331
        %s333 = sand.u32 %s84, 1
        %s334 = smul.addr %s333, 96
        %s335 = scalar_lea.vmem [#allocation6], %s334
        %p336 = pneg %p97
        %p337 = pneg %p94
        %p338 = pneg %p123
        %p339 = pneg %p120
        %p340 = scmp.lt.s32.totalorder %s24, 1
        %s341 = scalar_select %p340, %s24, 1
        %s342 = scalar_lea.vmem %s3, %s341
        %p343 = pneg %p149
        %p344 = pneg %p146
        %p345 = scmp.lt.s32.totalorder %s24, 1
        %s346 = scalar_select %p345, %s24, 1
        %s347 = scalar_lea.vmem %s4, %s346
        %p348 = pneg %p175
        %p349 = pneg %p172
        %p350 = scmp.lt.s32.totalorder %s24, 1
        %s351 = scalar_select %p350, %s24, 1
        %s352 = scalar_lea.vmem %s5, %s351
        %p353 = pneg %p201
        %p354 = pneg %p198
        %p355 = scmp.lt.s32.totalorder %s24, 1
        %s356 = scalar_select %p355, %s24, 1
        %s357 = scalar_lea.vmem %s6, %s356
        %p358 = scmp.lt.s32.totalorder %s24, 1
        %s359 = scalar_select %p358, %s24, 1
        %s360 = scalar_lea.vmem %s3, %s359
        %p361 = scmp.lt.s32.totalorder %s24, 1
        %s362 = scalar_select %p361, %s24, 1
        %s363 = scalar_lea.vmem %s4, %s362
        %p364 = scmp.lt.s32.totalorder %s24, 1
        %s365 = scalar_select %p364, %s24, 1
        %s366 = scalar_lea.vmem %s5, %s365
        %p367 = scmp.lt.s32.totalorder %s24, 1
        %s368 = scalar_select %p367, %s24, 1
        %s369 = scalar_lea.vmem %s6, %s368
        %v370 = vlaneseq
        %v371 = vand.u32 %v370, 127
        %v372 = vlaneseq
        %v373 = vshrl.u32 %v372, 7
        %v374 = vadd.s32 %v373, 8
        %v375 = vadd.s32 %v373, 16
        %v376 = vadd.s32 %v373, 24
        %v377 = vadd.s32 %v373, 32
        %v378 = vadd.s32 %v373, 40
        %v379 = vadd.s32 %v373, 48
        %v380 = vadd.s32 %v373, 56
        %v381 = vadd.s32 %v373, 64
        %v382 = vadd.s32 %v373, 72
        %v383 = vadd.s32 %v373, 80
        %v384 = vadd.s32 %v373, 88
        %vm385 = vcmp.ne.s32.totalorder %v371, 0
        %v386 = vsel %vm385, 1, 0
        %v387 = vcvt.s32.f32 %v386
        %vm388 = vcmp.ne.s32.totalorder %v371, 127
        %v389 = vsel %vm388, 1, 0
        %v390 = vcvt.s32.f32 %v389
        %vm391 = vcmp.ne.s32.totalorder %v373, 0
        %vm392 = vcmp.ne.s32.totalorder %v374, 0
        %vm393 = vcmp.ne.s32.totalorder %v375, 0
        %vm394 = vcmp.ne.s32.totalorder %v376, 0
        %vm395 = vcmp.ne.s32.totalorder %v377, 0
        %vm396 = vcmp.ne.s32.totalorder %v378, 0
        %vm397 = vcmp.ne.s32.totalorder %v379, 0
        %vm398 = vcmp.ne.s32.totalorder %v380, 0
        %vm399 = vcmp.ne.s32.totalorder %v381, 0
        %vm400 = vcmp.ne.s32.totalorder %v382, 0
        %vm401 = vcmp.ne.s32.totalorder %v383, 0
        %vm402 = vcmp.ne.s32.totalorder %v384, 0
        %v403 = vsel %vm391, 1, 0
        %v404 = vsel %vm392, 1, 0
        %v405 = vsel %vm393, 1, 0
        %v406 = vsel %vm394, 1, 0
        %v407 = vsel %vm395, 1, 0
        %v408 = vsel %vm396, 1, 0
        %v409 = vsel %vm397, 1, 0
        %v410 = vsel %vm398, 1, 0
        %v411 = vsel %vm399, 1, 0
        %v412 = vsel %vm400, 1, 0
        %v413 = vsel %vm401, 1, 0
        %v414 = vsel %vm402, 1, 0
        %v415 = vcvt.s32.f32 %v403
        %v416 = vcvt.s32.f32 %v404
        %v417 = vcvt.s32.f32 %v405
        %v418 = vcvt.s32.f32 %v406
        %v419 = vcvt.s32.f32 %v407
        %v420 = vcvt.s32.f32 %v408
        %v421 = vcvt.s32.f32 %v409
        %v422 = vcvt.s32.f32 %v410
        %v423 = vcvt.s32.f32 %v411
        %v424 = vcvt.s32.f32 %v412
        %v425 = vcvt.s32.f32 %v413
        %v426 = vcvt.s32.f32 %v414
        %vm427 = vcmp.ne.s32.totalorder %v373, 95
        %vm428 = vcmp.ne.s32.totalorder %v374, 95
        %vm429 = vcmp.ne.s32.totalorder %v375, 95
        %vm430 = vcmp.ne.s32.totalorder %v376, 95
        %vm431 = vcmp.ne.s32.totalorder %v377, 95
        %vm432 = vcmp.ne.s32.totalorder %v378, 95
        %vm433 = vcmp.ne.s32.totalorder %v379, 95
        %vm434 = vcmp.ne.s32.totalorder %v380, 95
        %vm435 = vcmp.ne.s32.totalorder %v381, 95
        %vm436 = vcmp.ne.s32.totalorder %v382, 95
        %vm437 = vcmp.ne.s32.totalorder %v383, 95
        %vm438 = vcmp.ne.s32.totalorder %v384, 95
        %v439 = vsel %vm427, 1, 0
        %v440 = vsel %vm428, 1, 0
        %v441 = vsel %vm429, 1, 0
        %v442 = vsel %vm430, 1, 0
        %v443 = vsel %vm431, 1, 0
        %v444 = vsel %vm432, 1, 0
        %v445 = vsel %vm433, 1, 0
        %v446 = vsel %vm434, 1, 0
        %v447 = vsel %vm435, 1, 0
        %v448 = vsel %vm436, 1, 0
        %v449 = vsel %vm437, 1, 0
        %v450 = vsel %vm438, 1, 0
        %v451 = vcvt.s32.f32 %v439
        %v452 = vcvt.s32.f32 %v440
        %v453 = vcvt.s32.f32 %v441
        %v454 = vcvt.s32.f32 %v442
        %v455 = vcvt.s32.f32 %v443
        %v456 = vcvt.s32.f32 %v444
        %v457 = vcvt.s32.f32 %v445
        %v458 = vcvt.s32.f32 %v446
        %v459 = vcvt.s32.f32 %v447
        %v460 = vcvt.s32.f32 %v448
        %v461 = vcvt.s32.f32 %v449
        %v462 = vcvt.s32.f32 %v450
        %v463 = vld [vmem:[%s294] sm:$0xff]
        %v464 = vld [vmem:[%s294 + $0x8] sm:$0xff]
        %v465 = vld [vmem:[%s294 + $0x10] sm:$0xff]
        %v466 = vld [vmem:[%s294 + $0x18] sm:$0xff]
        %v467 = vld [vmem:[%s294 + $0x20] sm:$0xff]
        %v468 = vld [vmem:[%s294 + $0x28] sm:$0xff]
        %v469 = vld [vmem:[%s294 + $0x30] sm:$0xff]
        %v470 = vld [vmem:[%s294 + $0x38] sm:$0xff]
        %v471 = vld [vmem:[%s294 + $0x40] sm:$0xff]
        %v472 = vld [vmem:[%s294 + $0x48] sm:$0xff]
        %v473 = vld [vmem:[%s294 + $0x50] sm:$0xff]
        %v474 = vld [vmem:[%s294 + $0x58] sm:$0xff]
        %v475 = vld [vmem:[%s303] sm:$0xff]
        %v476 = vld [vmem:[%s303 + $0x8] sm:$0xff]
        %v477 = vld [vmem:[%s303 + $0x10] sm:$0xff]
        %v478 = vld [vmem:[%s303 + $0x18] sm:$0xff]
        %v479 = vld [vmem:[%s303 + $0x20] sm:$0xff]
        %v480 = vld [vmem:[%s303 + $0x28] sm:$0xff]
        %v481 = vld [vmem:[%s303 + $0x30] sm:$0xff]
        %v482 = vld [vmem:[%s303 + $0x38] sm:$0xff]
        %v483 = vld [vmem:[%s303 + $0x40] sm:$0xff]
        %v484 = vld [vmem:[%s303 + $0x48] sm:$0xff]
        %v485 = vld [vmem:[%s303 + $0x50] sm:$0xff]
        %v486 = vld [vmem:[%s303 + $0x58] sm:$0xff]
        %v487 = vld [vmem:[%s312] sm:$0xff]
        %v488 = vld [vmem:[%s312 + $0x8] sm:$0xff]
        %v489 = vld [vmem:[%s312 + $0x10] sm:$0xff]
        %v490 = vld [vmem:[%s312 + $0x18] sm:$0xff]
        %v491 = vld [vmem:[%s312 + $0x20] sm:$0xff]
        %v492 = vld [vmem:[%s312 + $0x28] sm:$0xff]
        %v493 = vld [vmem:[%s312 + $0x30] sm:$0xff]
        %v494 = vld [vmem:[%s312 + $0x38] sm:$0xff]
        %v495 = vld [vmem:[%s312 + $0x40] sm:$0xff]
        %v496 = vld [vmem:[%s312 + $0x48] sm:$0xff]
        %v497 = vld [vmem:[%s312 + $0x50] sm:$0xff]
        %v498 = vld [vmem:[%s312 + $0x58] sm:$0xff]
        %v499 = vsub.f32 %v463, %v475
        %v500 = vsub.f32 %v464, %v476
        %v501 = vsub.f32 %v465, %v477
        %v502 = vsub.f32 %v466, %v478
        %v503 = vsub.f32 %v467, %v479
        %v504 = vsub.f32 %v468, %v480
        %v505 = vsub.f32 %v469, %v481
        %v506 = vsub.f32 %v470, %v482
        %v507 = vsub.f32 %v471, %v483
        %v508 = vsub.f32 %v472, %v484
        %v509 = vsub.f32 %v473, %v485
        %v510 = vsub.f32 %v474, %v486
        %v511 = vmul.f32 %v499, %v499
        %v512 = vmul.f32 %v500, %v500
        %v513 = vmul.f32 %v501, %v501
        %v514 = vmul.f32 %v502, %v502
        %v515 = vmul.f32 %v503, %v503
        %v516 = vmul.f32 %v504, %v504
        %v517 = vmul.f32 %v505, %v505
        %v518 = vmul.f32 %v506, %v506
        %v519 = vmul.f32 %v507, %v507
        %v520 = vmul.f32 %v508, %v508
        %v521 = vmul.f32 %v509, %v509
        %v522 = vmul.f32 %v510, %v510
        %v523 = vadd.f32 %v511, %v512
        %v524 = vadd.f32 %v523, %v513
        %v525 = vadd.f32 %v524, %v514
        %v526 = vadd.f32 %v525, %v515
        %v527 = vadd.f32 %v526, %v516
        %v528 = vadd.f32 %v527, %v517
        %v529 = vadd.f32 %v528, %v518
        %v530 = vadd.f32 %v529, %v519
        %v531 = vadd.f32 %v530, %v520
        %v532 = vadd.f32 %v531, %v521
        %v533 = vadd.f32 %v532, %v522
        %534 = vadd.xlane.f32.xlu0 %v533
        %v535 = vpop.xlane.xlu0 %534
        %v536 = vrot.slane %v535, 4
        %v537 = vadd.f32 %v535, %v536
        %v538 = vrot.slane %v537, 2
        %v539 = vadd.f32 %v537, %v538
        %v540 = vrot.slane %v539, 1
        %v541 = vadd.f32 %v539, %v540
        %s542 = vtos %v541
        %v543 = vstv %s542
        %v544 = vadd.f32 %v543, 0.0
        %v545 = vadd.f32 %v487, %v488
        %v546 = vadd.f32 %v545, %v489
        %v547 = vadd.f32 %v546, %v490
        %v548 = vadd.f32 %v547, %v491
        %v549 = vadd.f32 %v548, %v492
        %v550 = vadd.f32 %v549, %v493
        %v551 = vadd.f32 %v550, %v494
        %v552 = vadd.f32 %v551, %v495
        %v553 = vadd.f32 %v552, %v496
        %v554 = vadd.f32 %v553, %v497
        %v555 = vadd.f32 %v554, %v498
        %556 = vadd.xlane.f32.xlu0 %v555
        %v557 = vpop.xlane.xlu0 %556
        %v558 = vrot.slane %v557, 4
        %v559 = vadd.f32 %v557, %v558
        %v560 = vrot.slane %v559, 2
        %v561 = vadd.f32 %v559, %v560
        %v562 = vrot.slane %v561, 1
        %v563 = vadd.f32 %v561, %v562
        %s564 = vtos %v563
        %v565 = vstv %s564
        %v566 = vadd.f32 %v565, 0.0
        %vm567 = vcmp.gt.f32.partialorder %v487, 0.0
        %vm568 = vcmp.gt.f32.partialorder %v488, 0.0
        %vm569 = vcmp.gt.f32.partialorder %v489, 0.0
        %vm570 = vcmp.gt.f32.partialorder %v490, 0.0
        %vm571 = vcmp.gt.f32.partialorder %v491, 0.0
        %vm572 = vcmp.gt.f32.partialorder %v492, 0.0
        %vm573 = vcmp.gt.f32.partialorder %v493, 0.0
        %vm574 = vcmp.gt.f32.partialorder %v494, 0.0
        %vm575 = vcmp.gt.f32.partialorder %v495, 0.0
        %vm576 = vcmp.gt.f32.partialorder %v496, 0.0
        %vm577 = vcmp.gt.f32.partialorder %v497, 0.0
        %vm578 = vcmp.gt.f32.partialorder %v498, 0.0
        %v579 = vsel %vm567, 1, 0
        %v580 = vsel %vm568, 1, 0
        %v581 = vsel %vm569, 1, 0
        %v582 = vsel %vm570, 1, 0
        %v583 = vsel %vm571, 1, 0
        %v584 = vsel %vm572, 1, 0
        %v585 = vsel %vm573, 1, 0
        %v586 = vsel %vm574, 1, 0
        %v587 = vsel %vm575, 1, 0
        %v588 = vsel %vm576, 1, 0
        %v589 = vsel %vm577, 1, 0
        %v590 = vsel %vm578, 1, 0
        %v591 = vcvt.s32.f32 %v579
        %v592 = vcvt.s32.f32 %v580
        %v593 = vcvt.s32.f32 %v581
        %v594 = vcvt.s32.f32 %v582
        %v595 = vcvt.s32.f32 %v583
        %v596 = vcvt.s32.f32 %v584
        %v597 = vcvt.s32.f32 %v585
        %v598 = vcvt.s32.f32 %v586
        %v599 = vcvt.s32.f32 %v587
        %v600 = vcvt.s32.f32 %v588
        %v601 = vcvt.s32.f32 %v589
        %v602 = vcvt.s32.f32 %v590
        %v603 = vadd.f32 %v591, %v592
        %v604 = vadd.f32 %v603, %v593
        %v605 = vadd.f32 %v604, %v594
        %v606 = vadd.f32 %v605, %v595
        %v607 = vadd.f32 %v606, %v596
        %v608 = vadd.f32 %v607, %v597
        %v609 = vadd.f32 %v608, %v598
        %v610 = vadd.f32 %v609, %v599
        %v611 = vadd.f32 %v610, %v600
        %v612 = vadd.f32 %v611, %v601
        %v613 = vadd.f32 %v612, %v602
        %614 = vadd.xlane.f32.xlu0 %v613
        %v615 = vpop.xlane.xlu0 %614
        %v616 = vrot.slane %v615, 4
        %v617 = vadd.f32 %v615, %v616
        %v618 = vrot.slane %v617, 2
        %v619 = vadd.f32 %v617, %v618
        %v620 = vrot.slane %v619, 1
        %v621 = vadd.f32 %v619, %v620
        %s622 = vtos %v621
        %v623 = vstv %s622
        %v624 = vadd.f32 %v623, 0.0
        %625 = vrot.lane.b32.xlu0 %v463, 1
        %v626 = vpop.permute.xlu0 %625
        %627 = vrot.lane.b32.xlu0 %v464, 1
        %v628 = vpop.permute.xlu0 %627
        %629 = vrot.lane.b32.xlu0 %v465, 1
        %v630 = vpop.permute.xlu0 %629
        %631 = vrot.lane.b32.xlu0 %v466, 1
        %v632 = vpop.permute.xlu0 %631
        %633 = vrot.lane.b32.xlu0 %v467, 1
        %v634 = vpop.permute.xlu0 %633
        %635 = vrot.lane.b32.xlu0 %v468, 1
        %v636 = vpop.permute.xlu0 %635
        %637 = vrot.lane.b32.xlu0 %v469, 1
        %v638 = vpop.permute.xlu0 %637
        %639 = vrot.lane.b32.xlu0 %v470, 1
        %v640 = vpop.permute.xlu0 %639
        %641 = vrot.lane.b32.xlu0 %v471, 1
        %v642 = vpop.permute.xlu0 %641
        %643 = vrot.lane.b32.xlu0 %v472, 1
        %v644 = vpop.permute.xlu0 %643
        %645 = vrot.lane.b32.xlu0 %v473, 1
        %v646 = vpop.permute.xlu0 %645
        %647 = vrot.lane.b32.xlu0 %v474, 1
        %v648 = vpop.permute.xlu0 %647
        %v649 = vmul.f32 %v626, %v387
        %v650 = vmul.f32 %v628, %v387
        %v651 = vmul.f32 %v630, %v387
        %v652 = vmul.f32 %v632, %v387
        %v653 = vmul.f32 %v634, %v387
        %v654 = vmul.f32 %v636, %v387
        %v655 = vmul.f32 %v638, %v387
        %v656 = vmul.f32 %v640, %v387
        %v657 = vmul.f32 %v642, %v387
        %v658 = vmul.f32 %v644, %v387
        %v659 = vmul.f32 %v646, %v387
        %v660 = vmul.f32 %v648, %v387
        %661 = vrot.lane.b32.xlu0 %v463, 127
        %v662 = vpop.permute.xlu0 %661
        %663 = vrot.lane.b32.xlu0 %v464, 127
        %v664 = vpop.permute.xlu0 %663
        %665 = vrot.lane.b32.xlu0 %v465, 127
        %v666 = vpop.permute.xlu0 %665
        %667 = vrot.lane.b32.xlu0 %v466, 127
        %v668 = vpop.permute.xlu0 %667
        %669 = vrot.lane.b32.xlu0 %v467, 127
        %v670 = vpop.permute.xlu0 %669
        %671 = vrot.lane.b32.xlu0 %v468, 127
        %v672 = vpop.permute.xlu0 %671
        %673 = vrot.lane.b32.xlu0 %v469, 127
        %v674 = vpop.permute.xlu0 %673
        %675 = vrot.lane.b32.xlu0 %v470, 127
        %v676 = vpop.permute.xlu0 %675
        %677 = vrot.lane.b32.xlu0 %v471, 127
        %v678 = vpop.permute.xlu0 %677
        %679 = vrot.lane.b32.xlu0 %v472, 127
        %v680 = vpop.permute.xlu0 %679
        %681 = vrot.lane.b32.xlu0 %v473, 127
        %v682 = vpop.permute.xlu0 %681
        %683 = vrot.lane.b32.xlu0 %v474, 127
        %v684 = vpop.permute.xlu0 %683
        %v685 = vmul.f32 %v662, %v390
        %v686 = vmul.f32 %v664, %v390
        %v687 = vmul.f32 %v666, %v390
        %v688 = vmul.f32 %v668, %v390
        %v689 = vmul.f32 %v670, %v390
        %v690 = vmul.f32 %v672, %v390
        %v691 = vmul.f32 %v674, %v390
        %v692 = vmul.f32 %v676, %v390
        %v693 = vmul.f32 %v678, %v390
        %v694 = vmul.f32 %v680, %v390
        %v695 = vmul.f32 %v682, %v390
        %v696 = vmul.f32 %v684, %v390
        %v697 = vrot.slane %v463, 7
        %v698 = vrot.slane %v464, 7
        %v699 = vrot.slane %v465, 7
        %v700 = vrot.slane %v466, 7
        %v701 = vrot.slane %v467, 7
        %v702 = vrot.slane %v468, 7
        %v703 = vrot.slane %v469, 7
        %v704 = vrot.slane %v470, 7
        %v705 = vrot.slane %v471, 7
        %v706 = vrot.slane %v472, 7
        %v707 = vrot.slane %v473, 7
        %v708 = vrot.slane %v474, 7
        %vm709 = vcmp.lt.s32.totalorder %v373, 1
        %v710 = vsel %vm709, %v707, %v708
        %v711 = vsel %vm709, %v706, %v707
        %v712 = vsel %vm709, %v705, %v706
        %v713 = vsel %vm709, %v704, %v705
        %v714 = vsel %vm709, %v703, %v704
        %v715 = vsel %vm709, %v702, %v703
        %v716 = vsel %vm709, %v701, %v702
        %v717 = vsel %vm709, %v700, %v701
        %v718 = vsel %vm709, %v699, %v700
        %v719 = vsel %vm709, %v698, %v699
        %v720 = vsel %vm709, %v697, %v698
        %v721 = vsel %vm709, %v708, %v697
        %v722 = vmul.f32 %v721, %v415
        %v723 = vmul.f32 %v720, %v416
        %v724 = vmul.f32 %v719, %v417
        %v725 = vmul.f32 %v718, %v418
        %v726 = vmul.f32 %v717, %v419
        %v727 = vmul.f32 %v716, %v420
        %v728 = vmul.f32 %v715, %v421
        %v729 = vmul.f32 %v714, %v422
        %v730 = vmul.f32 %v713, %v423
        %v731 = vmul.f32 %v712, %v424
        %v732 = vmul.f32 %v711, %v425
        %v733 = vmul.f32 %v710, %v426
        %v734 = vrot.slane %v463, 1
        %v735 = vrot.slane %v464, 1
        %v736 = vrot.slane %v465, 1
        %v737 = vrot.slane %v466, 1
        %v738 = vrot.slane %v467, 1
        %v739 = vrot.slane %v468, 1
        %v740 = vrot.slane %v469, 1
        %v741 = vrot.slane %v470, 1
        %v742 = vrot.slane %v471, 1
        %v743 = vrot.slane %v472, 1
        %v744 = vrot.slane %v473, 1
        %v745 = vrot.slane %v474, 1
        %vm746 = vcmp.lt.s32.totalorder %v373, 7
        %v747 = vsel %vm746, %v744, %v745
        %v748 = vsel %vm746, %v743, %v744
        %v749 = vsel %vm746, %v742, %v743
        %v750 = vsel %vm746, %v741, %v742
        %v751 = vsel %vm746, %v740, %v741
        %v752 = vsel %vm746, %v739, %v740
        %v753 = vsel %vm746, %v738, %v739
        %v754 = vsel %vm746, %v737, %v738
        %v755 = vsel %vm746, %v736, %v737
        %v756 = vsel %vm746, %v735, %v736
        %v757 = vsel %vm746, %v734, %v735
        %v758 = vsel %vm746, %v745, %v734
        %v759 = vmul.f32 %v757, %v451
        %v760 = vmul.f32 %v756, %v452
        %v761 = vmul.f32 %v755, %v453
        %v762 = vmul.f32 %v754, %v454
        %v763 = vmul.f32 %v753, %v455
        %v764 = vmul.f32 %v752, %v456
        %v765 = vmul.f32 %v751, %v457
        %v766 = vmul.f32 %v750, %v458
        %v767 = vmul.f32 %v749, %v459
        %v768 = vmul.f32 %v748, %v460
        %v769 = vmul.f32 %v747, %v461
        %v770 = vmul.f32 %v758, %v462
        %v771 = vsub.f32 %v685, %v649
        %v772 = vsub.f32 %v686, %v650
        %v773 = vsub.f32 %v687, %v651
        %v774 = vsub.f32 %v688, %v652
        %v775 = vsub.f32 %v689, %v653
        %v776 = vsub.f32 %v690, %v654
        %v777 = vsub.f32 %v691, %v655
        %v778 = vsub.f32 %v692, %v656
        %v779 = vsub.f32 %v693, %v657
        %v780 = vsub.f32 %v694, %v658
        %v781 = vsub.f32 %v695, %v659
        %v782 = vsub.f32 %v696, %v660
        %v783 = vand.u32 2147483647, %v771
        %v784 = vand.u32 2147483647, %v772
        %v785 = vand.u32 2147483647, %v773
        %v786 = vand.u32 2147483647, %v774
        %v787 = vand.u32 2147483647, %v775
        %v788 = vand.u32 2147483647, %v776
        %v789 = vand.u32 2147483647, %v777
        %v790 = vand.u32 2147483647, %v778
        %v791 = vand.u32 2147483647, %v779
        %v792 = vand.u32 2147483647, %v780
        %v793 = vand.u32 2147483647, %v781
        %v794 = vand.u32 2147483647, %v782
        %v795 = vsub.f32 %v759, %v722
        %v796 = vsub.f32 %v760, %v723
        %v797 = vsub.f32 %v761, %v724
        %v798 = vsub.f32 %v762, %v725
        %v799 = vsub.f32 %v763, %v726
        %v800 = vsub.f32 %v764, %v727
        %v801 = vsub.f32 %v765, %v728
        %v802 = vsub.f32 %v766, %v729
        %v803 = vsub.f32 %v767, %v730
        %v804 = vsub.f32 %v768, %v731
        %v805 = vsub.f32 %v769, %v732
        %v806 = vsub.f32 %v770, %v733
        %v807 = vand.u32 2147483647, %v795
        %v808 = vand.u32 2147483647, %v796
        %v809 = vand.u32 2147483647, %v797
        %v810 = vand.u32 2147483647, %v798
        %v811 = vand.u32 2147483647, %v799
        %v812 = vand.u32 2147483647, %v800
        %v813 = vand.u32 2147483647, %v801
        %v814 = vand.u32 2147483647, %v802
        %v815 = vand.u32 2147483647, %v803
        %v816 = vand.u32 2147483647, %v804
        %v817 = vand.u32 2147483647, %v805
        %v818 = vand.u32 2147483647, %v806
        %v819 = vadd.f32 %v783, %v807
        %v820 = vadd.f32 %v784, %v808
        %v821 = vadd.f32 %v785, %v809
        %v822 = vadd.f32 %v786, %v810
        %v823 = vadd.f32 %v787, %v811
        %v824 = vadd.f32 %v788, %v812
        %v825 = vadd.f32 %v789, %v813
        %v826 = vadd.f32 %v790, %v814
        %v827 = vadd.f32 %v791, %v815
        %v828 = vadd.f32 %v792, %v816
        %v829 = vadd.f32 %v793, %v817
        %v830 = vadd.f32 %v794, %v818
        %v831 = vmul.f32 %v487, %v819
        %v832 = vmul.f32 %v488, %v820
        %v833 = vmul.f32 %v489, %v821
        %v834 = vmul.f32 %v490, %v822
        %v835 = vmul.f32 %v491, %v823
        %v836 = vmul.f32 %v492, %v824
        %v837 = vmul.f32 %v493, %v825
        %v838 = vmul.f32 %v494, %v826
        %v839 = vmul.f32 %v495, %v827
        %v840 = vmul.f32 %v496, %v828
        %v841 = vmul.f32 %v497, %v829
        %v842 = vmul.f32 %v498, %v830
        %v843 = vadd.f32 %v831, %v832
        %v844 = vadd.f32 %v843, %v833
        %v845 = vadd.f32 %v844, %v834
        %v846 = vadd.f32 %v845, %v835
        %v847 = vadd.f32 %v846, %v836
        %v848 = vadd.f32 %v847, %v837
        %v849 = vadd.f32 %v848, %v838
        %v850 = vadd.f32 %v849, %v839
        %v851 = vadd.f32 %v850, %v840
        %v852 = vadd.f32 %v851, %v841
        %v853 = vadd.f32 %v852, %v842
        %854 = vadd.xlane.f32.xlu0 %v853
        %v855 = vpop.xlane.xlu0 %854
        %v856 = vrot.slane %v855, 4
        %v857 = vadd.f32 %v855, %v856
        %v858 = vrot.slane %v857, 2
        %v859 = vadd.f32 %v857, %v858
        %v860 = vrot.slane %v859, 1
        %v861 = vadd.f32 %v859, %v860
        %s862 = vtos %v861
        %v863 = vstv %s862
        %v864 = vadd.f32 %v863, 0.0
        %vm865 = vcmask 0
        %866 = vst.msk [vmem:[%s360] sm:$0x1] %vm865, %v544
        %867 = vst.msk [vmem:[%s363] sm:$0x1] %vm865, %v566
        %868 = vst.msk [vmem:[%s366] sm:$0x1] %vm865, %v624
        %869 = vst.msk [vmem:[%s369] sm:$0x1] %vm865, %v864
        %p870 = scmp.lt.s32.totalorder %s24, 1
        %s871 = scalar_select %p870, %s24, 1
        %s872 = scalar_lea.vmem %s3, %s871
        %p873 = scmp.lt.s32.totalorder %s24, 1
        %s874 = scalar_select %p873, %s24, 1
        %s875 = scalar_lea.vmem %s4, %s874
        %p876 = scmp.lt.s32.totalorder %s24, 1
        %s877 = scalar_select %p876, %s24, 1
        %s878 = scalar_lea.vmem %s5, %s877
        %p879 = scmp.lt.s32.totalorder %s24, 1
        %s880 = scalar_select %p879, %s24, 1
        %s881 = scalar_lea.vmem %s6, %s880
        // Predicated region
        $region45: #{tpu_custom_call.1} parent=31 // pred_check
          %p882 = pneg %p120
        $region46: #{tpu_custom_call.1} parent=31 // pred_check_branch
          %884 = sbr.rel (%p882) target = $region48
        $region47: #{tpu_custom_call.1} parent=31 // pred_region
          _
        $region48: #{tpu_custom_call.1} parent=31 // pred_fallthru
          _
        // Predicated region
        $region49: #{tpu_custom_call.1} parent=31 // pred_check
          %p885 = pneg %p146
        $region50: #{tpu_custom_call.1} parent=31 // pred_check_branch
          %887 = sbr.rel (%p885) target = $region52
        $region51: #{tpu_custom_call.1} parent=31 // pred_region
          _
        $region52: #{tpu_custom_call.1} parent=31 // pred_fallthru
          _
        // Predicated region
        $region53: #{tpu_custom_call.1} parent=31 // pred_check
          %p888 = pneg %p172
        $region54: #{tpu_custom_call.1} parent=31 // pred_check_branch
          %890 = sbr.rel (%p888) target = $region56
        $region55: #{tpu_custom_call.1} parent=31 // pred_region
          _
        $region56: #{tpu_custom_call.1} parent=31 // pred_fallthru
          _
        // Predicated region
        $region57: #{tpu_custom_call.1} parent=31 // pred_check
          %p891 = pneg %p198
        $region58: #{tpu_custom_call.1} parent=31 // pred_check_branch
          %893 = sbr.rel (%p891) target = $region60
        $region59: #{tpu_custom_call.1} parent=31 // pred_region
          _
        $region60: #{tpu_custom_call.1} parent=31 // pred_fallthru
          _
      $region32: #{tpu_custom_call.1} parent=5 // pred_fallthru
        _
      %p894 = scmp.le.s32.totalorder 2, %s19
      // Predicated region
      $region61: #{tpu_custom_call.1} parent=5 // pred_check
        %p895 = pneg %p894
      $region62: #{tpu_custom_call.1} parent=5 // pred_check_branch
        %897 = sbr.rel (%p895) target = $region64
      $region63: #{tpu_custom_call.1} parent=5 // pred_region
        %s898 = ssub.s32 %s19, 2
        // Predicated region
        $region65: #{tpu_custom_call.1} parent=63 // pred_check
          %p899 = pneg %p126
        $region66: #{tpu_custom_call.1} parent=63 // pred_check_branch
          %901 = sbr.rel (%p899) target = $region68
        $region67: #{tpu_custom_call.1} parent=63 // pred_region
          %p902 = scmp.lt.s32.totalorder %s25, 1
          %s903 = scalar_select %p902, %s25, 1
          %s904 = scalar_lea.vmem %s3, %s903
        $region68: #{tpu_custom_call.1} parent=63 // pred_fallthru
          _
        // Predicated region
        $region69: #{tpu_custom_call.1} parent=63 // pred_check
          %p905 = pneg %p152
        $region70: #{tpu_custom_call.1} parent=63 // pred_check_branch
          %907 = sbr.rel (%p905) target = $region72
        $region71: #{tpu_custom_call.1} parent=63 // pred_region
          %p908 = scmp.lt.s32.totalorder %s25, 1
          %s909 = scalar_select %p908, %s25, 1
          %s910 = scalar_lea.vmem %s4, %s909
        $region72: #{tpu_custom_call.1} parent=63 // pred_fallthru
          _
        // Predicated region
        $region73: #{tpu_custom_call.1} parent=63 // pred_check
          %p911 = pneg %p178
        $region74: #{tpu_custom_call.1} parent=63 // pred_check_branch
          %913 = sbr.rel (%p911) target = $region76
        $region75: #{tpu_custom_call.1} parent=63 // pred_region
          %p914 = scmp.lt.s32.totalorder %s25, 1
          %s915 = scalar_select %p914, %s25, 1
          %s916 = scalar_lea.vmem %s5, %s915
        $region76: #{tpu_custom_call.1} parent=63 // pred_fallthru
          _
        // Predicated region
        $region77: #{tpu_custom_call.1} parent=63 // pred_check
          %p917 = pneg %p204
        $region78: #{tpu_custom_call.1} parent=63 // pred_check_branch
          %919 = sbr.rel (%p917) target = $region80
        $region79: #{tpu_custom_call.1} parent=63 // pred_region
          %p920 = scmp.lt.s32.totalorder %s25, 1
          %s921 = scalar_select %p920, %s25, 1
          %s922 = scalar_lea.vmem %s6, %s921
        $region80: #{tpu_custom_call.1} parent=63 // pred_fallthru
          _
      $region64: #{tpu_custom_call.1} parent=5 // pred_fallthru
        _
    $region6: #{tpu_custom_call.1} parent=1 // loop_footer
      %s23 = sadd.s32 1, %s19
    $region7: #{tpu_custom_call.1} parent=1 // loop_footer_branch
      %18 = sbr.rel target = $region3
    $region8: #{tpu_custom_call.1} parent=1 // loop_exit
      _
    %923 = vsyncpa [#allocation3], 1
    %s924 = scalar_lea.sflag [#allocation3], 1
    %925 = vsyncpa %s924, 1
    %926 = vsyncpa [#allocation5], 1
    %s927 = scalar_lea.sflag [#allocation5], 1
    %928 = vsyncpa %s927, 1

</llo_original>
